<compile_context>
chip_gen: v7x
topology: tpu7x:2x2x1
jax: 0.10.0
libtpu: 0.0.40
codegen_flags: <defaults>
</compile_context>

<pallas_src>
import functools

import jax
import jax.numpy as jnp
from jax.experimental import pallas as pl
from jax.experimental.pallas import tpu as pltpu

ACT_MAX_VALUE = 4.0  # UNIQ default clamp range for activations


def _act_quantize_kernel(x_ref, o_ref, *, scale, inv_scale):
    """Uniform activation quantization on one VMEM tile (f32 compute)."""
    y = x_ref[...].astype(jnp.float32)
    y = jnp.clip(y, 0.0, ACT_MAX_VALUE)            # relu + clamp to act_max
    # NOTE: multiply-by-reciprocal can differ from PyTorch's division by ~1 ulp.
    o_ref[...] = (jnp.round(y * scale) * inv_scale).astype(o_ref.dtype)


def _choose_layout(n, itemsize):
    """Pick a lane-dense (rows, lanes) layout and a ~4 MiB block of rows.

    Caller guarantees n % 128 == 0, so no padding is ever needed.
    """
    lanes = 128
    for cand in (2048, 1024, 512, 256):
        if n % cand == 0 and n >= cand * 8:
            lanes = cand
            break
    rows = n // lanes
    # Sublane packing multiple: f32 -> 8, bf16 -> 16, int8/fp8 -> 32.
    row_mult = max(8, 32 // max(itemsize, 1))
    # ~4 MiB per block buffer => ~16 MiB double-buffered in+out; the pallas_call
    # below raises vmem_limit_bytes to 32 MiB so this is safe on v5e/v6e/v7x.
    target_block_bytes = 4 * 1024 * 1024
    block_rows = target_block_bytes // (lanes * itemsize)
    block_rows = max(row_mult, (block_rows // row_mult) * row_mult)
    # Don't make the block larger than the (row-rounded) data itself.
    block_rows = min(block_rows, pl.cdiv(rows, row_mult) * row_mult)
    # Ensure >= 2 grid steps when possible so v7x's two TensorCores both get
    # work (the grid axis is marked "parallel").  On single-TC v5e/v6e this
    # costs at most one extra ~0.35 us step.
    while block_rows > row_mult and pl.cdiv(rows, block_rows) < 2:
        block_rows = max(row_mult, (block_rows // 2 // row_mult) * row_mult)
    return lanes, rows, block_rows


def act_quant_forward(
    x,
    *,
    quant=False,
    noise=False,
    bitwidth=32,
    training=False,
    quatize_during_training=False,
    noise_during_training=False,
    donate=False,
):
    """JAX/Pallas equivalent of ActQuant.forward for an NCHW (or any) input."""
    assert isinstance(bitwidth, int)

    do_quant = quant and ((not training) or (training and quatize_during_training))
    do_noise = (not do_quant) and noise and training and noise_during_training

    if not do_quant:
        # TODO(synk): act_noise (training-only stochastic noise injection) lives
        # in UNIQ's quantize.py which is not part of this module; the noise path
        # falls back to the plain ReLU path here.
        del do_noise
        # Plain ReLU: skip Pallas entirely so XLA can fuse it into the producer
        # or consumer (avoids a standalone full HBM read+write pass).
        return jnp.maximum(x, 0)

    orig_shape = x.shape
    dtype = x.dtype
    n = x.size

    # NOTE: for bitwidth >= ~24, scale exceeds f32 integer precision and the
    # quantization is effectively identity; typical UNIQ use is 2-8 bits.
    scale = (2.0 ** bitwidth - 1.0) / ACT_MAX_VALUE
    inv_scale = 1.0 / scale

    if n == 0:
        return x
    if n % 128 != 0:
        # Odd total sizes: avoid a full-array pad copy (and output slice copy)
        # around an HBM-bound kernel -- a fused pure-jnp elementwise quantize is
        # already bandwidth-optimal for this rare case.
        y = jnp.clip(x.astype(jnp.float32), 0.0, ACT_MAX_VALUE)
        return (jnp.round(y * scale) * inv_scale).astype(dtype)

    lanes, rows, block_rows = _choose_layout(n, dtype.itemsize)
    x2 = x.reshape(rows, lanes)  # contiguous reshape: no HBM copy

    kernel = functools.partial(_act_quantize_kernel, scale=scale, inv_scale=inv_scale)

    out2 = pl.pallas_call(
        kernel,
        out_shape=jax.ShapeDtypeStruct((rows, lanes), dtype),
        grid_spec=pltpu.PrefetchScalarGridSpec(
            num_scalar_prefetch=0,
            # Ragged last block is fine: OOB input reads are unspecified but
            # only feed masked (discarded) output writes.
            grid=(pl.cdiv(rows, block_rows),),
            in_specs=[pl.BlockSpec((block_rows, lanes), lambda i: (i, 0))],
            out_specs=pl.BlockSpec((block_rows, lanes), lambda i: (i, 0)),
        ),
        compiler_params=pltpu.CompilerParams(
            dimension_semantics=("parallel",),
            vmem_limit_bytes=32 * 1024 * 1024,
        ),
        input_output_aliases=({0: 0} if donate else {}),
    )(x2)

    return out2.reshape(orig_shape)


def _reference(x, *, do_quant, bitwidth):
    if do_quant:
        scale = (2.0 ** bitwidth - 1.0) / ACT_MAX_VALUE
        y = jnp.clip(x.astype(jnp.float32), 0.0, ACT_MAX_VALUE)
        return (jnp.round(y * scale) / scale).astype(x.dtype)
    return jnp.maximum(x, 0)


if __name__ == "__main__":
    key = jax.random.PRNGKey(0)
    x = jax.random.normal(key, (2, 4, 16, 16), dtype=jnp.float32) * 2.0

    # Path 1: eval-mode quantization (quant=True, bitwidth=4, training=False).
    y_q = act_quant_forward(x, quant=True, bitwidth=4, training=False)
    y_q = jax.block_until_ready(y_q)
    ref_q = _reference(x, do_quant=True, bitwidth=4)
    assert y_q.shape == x.shape and y_q.dtype == x.dtype
    assert jnp.allclose(y_q, ref_q, atol=1e-5), "quant path mismatch"

    # Path 2: quantize-during-training (quant=True, training=True, quatize_during_training=True).
    y_qt = act_quant_forward(x, quant=True, bitwidth=3, training=True,
                             quatize_during_training=True)
    y_qt = jax.block_until_ready(y_qt)
    assert jnp.allclose(y_qt, _reference(x, do_quant=True, bitwidth=3), atol=1e-5), \
        "quant-during-training path mismatch"

    # Path 3: default path (quant=False, noise=False) -> plain ReLU (fused jnp).
    y_r = act_quant_forward(x, quant=False, noise=False, bitwidth=32, training=False)
    y_r = jax.block_until_ready(y_r)
    assert jnp.allclose(y_r, _reference(x, do_quant=False, bitwidth=32), atol=1e-6), \
        "relu path mismatch"

    # Path 4: native bf16 input stays bf16 end-to-end on the quant path.
    xb = x.astype(jnp.bfloat16)
    y_b = act_quant_forward(xb, quant=True, bitwidth=4, training=False)
    y_b = jax.block_until_ready(y_b)
    assert y_b.dtype == jnp.bfloat16 and y_b.shape == xb.shape
    assert jnp.allclose(y_b.astype(jnp.float32),
                        _reference(xb, do_quant=True, bitwidth=4).astype(jnp.float32),
                        atol=1e-2), "bf16 quant path mismatch"

    # Path 5: larger tensor exercising a multi-step grid with a ragged last block.
    xl = jax.random.normal(jax.random.PRNGKey(1), (4, 32, 56, 56), dtype=jnp.float32) * 3.0
    y_l = act_quant_forward(xl, quant=True, bitwidth=5, training=False)
    y_l = jax.block_until_ready(y_l)
    assert jnp.allclose(y_l, _reference(xl, do_quant=True, bitwidth=5), atol=1e-5), \
        "large ragged-grid quant mismatch"

    # Path 6: size not divisible by 128 -> pure-jnp fallback (no pad copies).
    xo = jax.random.normal(jax.random.PRNGKey(2), (3, 5, 7), dtype=jnp.float32) * 2.0
    y_o = act_quant_forward(xo, quant=True, bitwidth=4, training=False)
    y_o = jax.block_until_ready(y_o)
    assert jnp.allclose(y_o, _reference(xo, do_quant=True, bitwidth=4), atol=1e-5), \
        "odd-size fallback mismatch"

    print("KERNEL_OK")
</pallas_src>

<mosaic_0001>
module attributes {stable_mosaic.version = 11 : i64} {
  func.func @_act_quantize_kernel(%arg0: i32, %arg1: memref<8x256xf32, #tpu.memory_space<vmem>>, %arg2: memref<8x256xf32, #tpu.memory_space<vmem>>) attributes {dimension_semantics = [#tpu.dimension_semantics<parallel>], iteration_bounds = array<i64: 1>, scalar_prefetch = 0 : i64, scratch_operands = 0 : i64, tpu.core_type = #tpu.core_type<tc>, window_params = [{transform_indices = @transform_0, window_bounds = array<i64: 8, 256>}, {transform_indices = @transform_1, window_bounds = array<i64: 8, 256>}]} {
    %c0 = arith.constant 0 : index
    %c0_0 = arith.constant 0 : index
    %0 = vector.load %arg1[%c0, %c0_0] : memref<8x256xf32, #tpu.memory_space<vmem>>, vector<8x256xf32>
    %cst = arith.constant 0.000000e+00 : f32
    %cst_1 = arith.constant 4.000000e+00 : f32
    %1 = vector.broadcast %cst : f32 to vector<8x256xf32>
    %2 = arith.maximumf %1, %0 : vector<8x256xf32>
    %3 = vector.broadcast %cst_1 : f32 to vector<8x256xf32>
    %4 = arith.minimumf %3, %2 : vector<8x256xf32>
    %cst_2 = arith.constant 3.750000e+00 : f32
    %5 = vector.broadcast %cst_2 : f32 to vector<8x256xf32>
    %6 = arith.mulf %4, %5 : vector<8x256xf32>
    %7 = math.roundeven %6 : vector<8x256xf32>
    %cst_3 = arith.constant 0.266666681 : f32
    %8 = vector.broadcast %cst_3 : f32 to vector<8x256xf32>
    %9 = arith.mulf %7, %8 : vector<8x256xf32>
    %c0_4 = arith.constant 0 : index
    %c0_5 = arith.constant 0 : index
    %10 = vector.load %arg2[%c0_4, %c0_5] : memref<8x256xf32, #tpu.memory_space<vmem>>, vector<8x256xf32>
    tpu.vector_store %arg2[%c0_4, %c0_5], %9 {strides = array<i32>} : memref<8x256xf32, #tpu.memory_space<vmem>>, vector<8x256xf32>,
    return
  }
  func.func @transform_0(%arg0: i32) -> (i32, i32) {
    %c0_i32 = arith.constant 0 : i32
    %c0_i32_0 = arith.constant 0 : i32
    return %arg0, %c0_i32 : i32, i32
  }
  func.func @transform_1(%arg0: i32) -> (i32, i32) {
    %c0_i32 = arith.constant 0 : i32
    %c0_i32_0 = arith.constant 0 : i32
    return %arg0, %c0_i32 : i32, i32
  }
}

</mosaic_0001>

<llo_original>
// kernel: tpu_custom_call.1
$region0: #{tpu_custom_call.1}
  #allocation0 [shape = 'u32[]', space=smem, size = 0x4, offset = 0x4, fixed_abs, tag = 'smem constant byte address 0x4 - core index']
  #allocation1 [shape = 'u32[144,128]{1,0:T(1,128)}', space=vmem, size = 0x12000, scoped, tag = 'internal scratch']
  %s0 = inlined_call_operand.hbm [shape: f32[8,256], index: 0, kind: input, shape index: {}]
  %s1 = inlined_call_operand.hbm [shape: f32[8,256], index: 1, kind: output, shape index: {}]
  %s2 = sld [smem:[#allocation0]]
  $region18: #{tpu_custom_call.1} parent=0
    _
  %s4 = ssub.s32 1, %s2
  %s5 = scalar_select 0, %s4, %s2
  $region1: #{tpu_custom_call.1} parent=0
    #allocation2 [shape = 'u8[8192]{0}', space=vmem, size = 0x2000, scoped, tag = 'input window, operand 0, single buffered']
    #allocation3 [shape = 's32[1]{0}', space=sflag, size = 0x4, scoped, tag = 'scoped memory for tpu_custom_call.1']
    #allocation4 [shape = 's32[1]{0}', space=sflag, size = 0x4, scoped, tag = 'scoped memory for tpu_custom_call.1']
    #allocation5 [shape = 'u8[8192]{0}', space=vmem, size = 0x2000, scoped, tag = 'output window, operand 0, single buffered']
    %6 = vsyncpa [#allocation3], 0
    %7 = vsyncpa [#allocation4], 0
    // Predicated region
    $region2: #{tpu_custom_call.1} parent=1 // pred_check
      _
    $region3: #{tpu_custom_call.1} parent=1 // pred_check_branch
      %9 = sbr.rel (0) target = $region5
    $region4: #{tpu_custom_call.1} parent=1 // pred_region
      %s11 = ssub.s32 256, 256
      %12 = vsyncadd [#allocation3], %s11
      %s14 = sshll.u32 [#allocation2], 4
      %s15 = int_to_ptr.vmem [resolvable:$true] %s14
      %17 = dma.hbm_to_vmem [thread:$0]  %s0, 256, %s15, [#allocation3]
    $region5: #{tpu_custom_call.1} parent=1 // pred_fallthru
      _
    // Predicated region
    $region6: #{tpu_custom_call.1} parent=1 // pred_check
      _
    $region7: #{tpu_custom_call.1} parent=1 // pred_check_branch
      %19 = sbr.rel (0) target = $region9
    $region8: #{tpu_custom_call.1} parent=1 // pred_region
      %20 = dma.done [#allocation3], 256
    $region9: #{tpu_custom_call.1} parent=1 // pred_fallthru
      _
    %v21 = vld [vmem:[#allocation2] sm:$0xff]
    %v22 = vld [vmem:[#allocation2 + $0x8] sm:$0xff]
    %v23 = vmax.f32 %v21, 0.0
    %v24 = vmax.f32 %v22, 0.0
    %v25 = vmin.f32 %v23, 4.0
    %v26 = vmin.f32 %v24, 4.0
    %v27 = vmul.f32 %v25, 3.75
    %v28 = vmul.f32 %v26, 3.75
    %v29 = vround.ne.pseudo %v27
    %v30 = vround.ne.pseudo %v28
    %v31 = vmul.f32 %v29, 0.26666668
    %v32 = vmul.f32 %v30, 0.26666668
    %33 = vst [vmem:[#allocation5] sm:$0xff] %v31
    %34 = vst [vmem:[#allocation5 + $0x8] sm:$0xff] %v32
    // Predicated region
    $region10: #{tpu_custom_call.1} parent=1 // pred_check
      _
    $region11: #{tpu_custom_call.1} parent=1 // pred_check_branch
      %36 = sbr.rel (0) target = $region13
    $region12: #{tpu_custom_call.1} parent=1 // pred_region
      %s38 = ssub.s32 256, 256
      %39 = vsyncadd [#allocation4], %s38
      %s41 = sshll.u32 [#allocation5], 4
      %s42 = int_to_ptr.vmem [resolvable:$true] %s41
      %44 = dma.vmem_to_hbm [thread:$0]  %s42, 256, %s1, [#allocation4]
    $region13: #{tpu_custom_call.1} parent=1 // pred_fallthru
      _
    // Predicated region
    $region14: #{tpu_custom_call.1} parent=1 // pred_check
      _
    $region15: #{tpu_custom_call.1} parent=1 // pred_check_branch
      %46 = sbr.rel (0) target = $region17
    $region16: #{tpu_custom_call.1} parent=1 // pred_region
      %47 = dma.done [#allocation4], 256
    $region17: #{tpu_custom_call.1} parent=1 // pred_fallthru
      _
    %48 = vsyncpa [#allocation3], 1
    %49 = vsyncpa [#allocation4], 1

</llo_original>
